<compile_context>
chip_gen: v7x
topology: tpu7x:2x2x1
jax: 0.10.0
libtpu: 0.0.40
codegen_flags: <defaults>
</compile_context>

<pallas_src>
import jax
import jax.numpy as jnp
from jax import lax
from jax.experimental import pallas as pl
from jax.experimental.pallas import tpu as pltpu

C_OUT = 30
K_SIZE = 64
LANE = 128
SUBLANE = 8


def _round_up(x, m):
    return ((x + m - 1) // m) * m


# --------------------------------------------------------------------------
# Pallas kernel: one MXU matmul + bias epilogue, everything resident in VMEM.
# --------------------------------------------------------------------------
def _im2col_matmul_kernel(p_ref, w_ref, b_ref, o_ref):
    # p_ref: (M_pad, KC_pad)      -- im2col patches, batch folded into M
    # w_ref: (KC_pad, C_out_pad)  -- packed conv weights (k major, c_in minor)
    # b_ref: (1, C_out_pad)       -- zero-padded bias
    # o_ref: (M_pad, C_out_pad)
    acc = jnp.dot(p_ref[...], w_ref[...], preferred_element_type=jnp.float32)
    o_ref[...] = (acc + b_ref[...]).astype(o_ref.dtype)


def _conv1d_im2col_pallas(patches, w, b):
    """patches: (M_pad, KC_pad), w: (KC_pad, C_out_pad), b: (1, C_out_pad)."""
    m_pad, _ = patches.shape
    _, c_out_pad = w.shape
    # Single block, no grid: no pipelining to exploit at this size, so avoid
    # the double-buffer allocations and prologue/epilogue DMA bookkeeping.
    return pl.pallas_call(
        _im2col_matmul_kernel,
        out_shape=jax.ShapeDtypeStruct((m_pad, c_out_pad), jnp.float32),
        in_specs=[
            pl.BlockSpec(memory_space=pltpu.MemorySpace.VMEM),
            pl.BlockSpec(memory_space=pltpu.MemorySpace.VMEM),
            pl.BlockSpec(memory_space=pltpu.MemorySpace.VMEM),
        ],
        out_specs=pl.BlockSpec(memory_space=pltpu.MemorySpace.VMEM),
    )(patches, w, b)


# --------------------------------------------------------------------------
# One-time (model-load) weight packing -- hoisted out of the per-call path.
# --------------------------------------------------------------------------
def pack_conv_params(conv_w, conv_b):
    """(C_out, C_in, K) PyTorch weights -> (K*C_in padded, C_out padded)."""
    c_out, c_in, k = conv_w.shape
    kc = k * c_in
    kc_pad = _round_up(kc, LANE)          # lane-aligned contraction dim
    c_out_pad = _round_up(c_out, LANE)    # lane-dense output (unmasked vst)
    # (C_out, C_in, K) -> (K, C_in, C_out) -> (K*C_in, C_out), zero-pad.
    w = jnp.transpose(conv_w, (2, 1, 0)).reshape(kc, c_out)
    w = jnp.pad(w, ((0, kc_pad - kc), (0, c_out_pad - c_out)))
    b = jnp.pad(conv_b, (0, c_out_pad - c_out)).reshape(1, c_out_pad)
    return w, b


# --------------------------------------------------------------------------
# Jitted forward: im2col + pallas matmul + output unpad, one host dispatch.
# --------------------------------------------------------------------------
@jax.jit
def attention_model_forward(x_ncl, w_packed, b_packed):
    """Equivalent of AttentionModel.forward (inference).

    x_ncl   : (N, C_in, L)            -- PyTorch NCL layout
    w_packed: (K*C_in pad, C_out pad) -- from pack_conv_params (static per model)
    b_packed: (1, C_out pad)
    returns (N, C_out, L - K + 1)
    """
    n, c_in, l = x_ncl.shape
    l_out = l - K_SIZE + 1

    # --- im2col (layout plumbing; fused by XLA inside this jitted program) --
    x_nlc = jnp.transpose(x_ncl, (0, 2, 1))             # NCL -> NLC
    # patch[:, l, k*C_in + c] = x[:, l + k, c]  (k major, c_in minor) --
    # matches the (K, C_in, C_out) weight flattening in pack_conv_params.
    patches = jnp.concatenate(
        [lax.slice_in_dim(x_nlc, k, k + l_out, axis=1) for k in range(K_SIZE)],
        axis=-1)                                        # (N, L_out, K*C_in)

    kc = K_SIZE * c_in
    m = n * l_out
    m_pad = _round_up(m, SUBLANE)                       # full-sublane M
    kc_pad = w_packed.shape[0]

    patches = patches.reshape(m, kc)
    patches = jnp.pad(patches, ((0, m_pad - m), (0, kc_pad - kc)))

    # --- single MXU matmul in Pallas ---------------------------------------
    y = _conv1d_im2col_pallas(patches, w_packed, b_packed)   # (M_pad, C_out_pad)

    # Slice padding off, restore (N, L_out, C_out), then PyTorch NCL output.
    y = y[:m, :C_OUT].reshape(n, l_out, C_OUT)
    # TODO(synk): F.dropout(p=0.3) is identity at inference; no RNG mask applied.
    return jnp.transpose(y, (0, 2, 1))                  # (N, C_out, L_out)


def _reference_conv1d(x_ncl, conv_w, conv_b):
    # Pure-JAX reference (NCL conv, valid padding).
    out = lax.conv_general_dilated(
        x_ncl, conv_w, window_strides=(1,), padding="VALID",
        dimension_numbers=("NCH", "OIH", "NCH"))
    return out + conv_b[None, :, None]


if __name__ == "__main__":
    key = jax.random.PRNGKey(0)
    k_x, k_w, k_b = jax.random.split(key, 3)

    N, C_IN, L = 2, 4, 96                               # L must be >= kernel_size (64)
    x = jax.random.normal(k_x, (N, C_IN, L), dtype=jnp.float32)
    conv_w = jax.random.normal(k_w, (C_OUT, C_IN, K_SIZE), dtype=jnp.float32) * 0.05
    conv_b = jax.random.normal(k_b, (C_OUT,), dtype=jnp.float32) * 0.05

    # Model-load-time packing (done once, not per forward call).
    w_packed, b_packed = pack_conv_params(conv_w, conv_b)
    w_packed, b_packed = jax.block_until_ready((w_packed, b_packed))

    out = attention_model_forward(x, w_packed, b_packed)
    out = jax.block_until_ready(out)

    ref = _reference_conv1d(x, conv_w, conv_b)
    assert out.shape == (N, C_OUT, L - K_SIZE + 1), out.shape
    assert jnp.allclose(out, ref, atol=1e-4, rtol=1e-4), "mismatch vs reference"

    print("KERNEL_OK")
</pallas_src>

<mosaic_0001>
module attributes {stable_mosaic.version = 11 : i64} {
  func.func @_im2col_matmul_kernel(%arg0: memref<72x256xf32, #tpu.memory_space<vmem>>, %arg1: memref<256x128xf32, #tpu.memory_space<vmem>>, %arg2: memref<1x128xf32, #tpu.memory_space<vmem>>, %arg3: memref<72x128xf32, #tpu.memory_space<vmem>>) attributes {dimension_semantics = [], scalar_prefetch = 0 : i64, scratch_operands = 0 : i64, tpu.core_type = #tpu.core_type<tc>} {
    %c0 = arith.constant 0 : index
    %c0_0 = arith.constant 0 : index
    %0 = vector.load %arg0[%c0, %c0_0] : memref<72x256xf32, #tpu.memory_space<vmem>>, vector<72x256xf32>
    %c0_1 = arith.constant 0 : index
    %c0_2 = arith.constant 0 : index
    %1 = vector.load %arg1[%c0_1, %c0_2] : memref<256x128xf32, #tpu.memory_space<vmem>>, vector<256x128xf32>
    %cst = arith.constant dense<0.000000e+00> : vector<72x128xf32>
    %2 = tpu.matmul %0, %1, %cst {dimension_numbers = #tpu.dot_dimension_numbers<[1], [0], [0], [1], [0, 0, 1, 1], [], []>} : vector<72x256xf32>, vector<256x128xf32>, vector<72x128xf32> -> vector<72x128xf32>
    %c0_3 = arith.constant 0 : index
    %c0_4 = arith.constant 0 : index
    %3 = vector.load %arg2[%c0_3, %c0_4] : memref<1x128xf32, #tpu.memory_space<vmem>>, vector<1x128xf32>
    %4 = vector.broadcast %3 : vector<1x128xf32> to vector<72x128xf32>
    %5 = arith.addf %2, %4 : vector<72x128xf32>
    %c0_5 = arith.constant 0 : index
    %c0_6 = arith.constant 0 : index
    %6 = vector.load %arg3[%c0_5, %c0_6] : memref<72x128xf32, #tpu.memory_space<vmem>>, vector<72x128xf32>
    tpu.vector_store %arg3[%c0_5, %c0_6], %5 {strides = array<i32>} : memref<72x128xf32, #tpu.memory_space<vmem>>, vector<72x128xf32>,
    return
  }
}

</mosaic_0001>

<llo_original>
// kernel: attention_model_forward.1
$region0: #{attention_model_forward.1}
  #allocation0 [shape = 'u32[]', space=smem, size = 0x4, offset = 0x4, fixed_abs, tag = 'smem constant byte address 0x4 - core index']
  #allocation1 [shape = 'u32[144,128]{1,0:T(1,128)}', space=vmem, size = 0x12000, scoped, tag = 'internal scratch']
  %s0 = inlined_call_operand.vmem [shape: f32[72,256], index: 0, kind: input, shape index: {}]
  %s1 = inlined_call_operand.vmem [shape: f32[256,128], index: 1, kind: input, shape index: {}]
  %s2 = inlined_call_operand.vmem [shape: f32[1,128], index: 2, kind: input, shape index: {}]
  %s3 = inlined_call_operand.vmem [shape: f32[72,128], index: 3, kind: output, shape index: {}]
  %s4 = sld [smem:[#allocation0]]
  $region22: #{attention_model_forward.1} parent=0
    _
  %s6 = ssub.s32 1, %s4
  %s7 = scalar_select 0, %s6, %s4
  // Predicated region
  $region2: #{attention_model_forward.1} parent=0 // pred_check
    _
  $region3: #{attention_model_forward.1} parent=0 // pred_check_branch
    %9 = sbr.rel (0) target = $region5
  $region4: #{attention_model_forward.1} parent=0 // pred_region
    _
  $region5: #{attention_model_forward.1} parent=0 // pred_fallthru
    _
  // Predicated region
  $region6: #{attention_model_forward.1} parent=0 // pred_check
    _
  $region7: #{attention_model_forward.1} parent=0 // pred_check_branch
    %11 = sbr.rel (0) target = $region9
  $region8: #{attention_model_forward.1} parent=0 // pred_region
    _
  $region9: #{attention_model_forward.1} parent=0 // pred_fallthru
    _
  // Predicated region
  $region10: #{attention_model_forward.1} parent=0 // pred_check
    _
  $region11: #{attention_model_forward.1} parent=0 // pred_check_branch
    %13 = sbr.rel (0) target = $region13
  $region12: #{attention_model_forward.1} parent=0 // pred_region
    _
  $region13: #{attention_model_forward.1} parent=0 // pred_fallthru
    _
  %v14 = vld [vmem:[%s0] sm:$0xff]
  %v15 = vld [vmem:[%s0 + $0x8] sm:$0xff]
  %v16 = vld [vmem:[%s0 + $0x10] sm:$0xff]
  %v17 = vld [vmem:[%s0 + $0x18] sm:$0xff]
  %v18 = vld [vmem:[%s0 + $0x20] sm:$0xff]
  %v19 = vld [vmem:[%s0 + $0x28] sm:$0xff]
  %v20 = vld [vmem:[%s0 + $0x30] sm:$0xff]
  %v21 = vld [vmem:[%s0 + $0x38] sm:$0xff]
  %v22 = vld [vmem:[%s0 + $0x40] sm:$0xff]
  %v23 = vld [vmem:[%s0 + $0x48] sm:$0xff]
  %v24 = vld [vmem:[%s0 + $0x50] sm:$0xff]
  %v25 = vld [vmem:[%s0 + $0x58] sm:$0xff]
  %v26 = vld [vmem:[%s0 + $0x60] sm:$0xff]
  %v27 = vld [vmem:[%s0 + $0x68] sm:$0xff]
  %v28 = vld [vmem:[%s0 + $0x70] sm:$0xff]
  %v29 = vld [vmem:[%s0 + $0x78] sm:$0xff]
  %v30 = vld [vmem:[%s0 + $0x80] sm:$0xff]
  %v31 = vld [vmem:[%s0 + $0x88] sm:$0xff]
  %v32 = vld [vmem:[%s1] sm:$0xff]
  %v33 = vld [vmem:[%s1 + $0x8] sm:$0xff]
  %v34 = vld [vmem:[%s1 + $0x10] sm:$0xff]
  %v35 = vld [vmem:[%s1 + $0x18] sm:$0xff]
  %v36 = vld [vmem:[%s1 + $0x20] sm:$0xff]
  %v37 = vld [vmem:[%s1 + $0x28] sm:$0xff]
  %v38 = vld [vmem:[%s1 + $0x30] sm:$0xff]
  %v39 = vld [vmem:[%s1 + $0x38] sm:$0xff]
  %v40 = vld [vmem:[%s1 + $0x40] sm:$0xff]
  %v41 = vld [vmem:[%s1 + $0x48] sm:$0xff]
  %v42 = vld [vmem:[%s1 + $0x50] sm:$0xff]
  %v43 = vld [vmem:[%s1 + $0x58] sm:$0xff]
  %v44 = vld [vmem:[%s1 + $0x60] sm:$0xff]
  %v45 = vld [vmem:[%s1 + $0x68] sm:$0xff]
  %v46 = vld [vmem:[%s1 + $0x70] sm:$0xff]
  %v47 = vld [vmem:[%s1 + $0x78] sm:$0xff]
  %v48 = vld [vmem:[%s1 + $0x80] sm:$0xff]
  %v49 = vld [vmem:[%s1 + $0x88] sm:$0xff]
  %v50 = vld [vmem:[%s1 + $0x90] sm:$0xff]
  %v51 = vld [vmem:[%s1 + $0x98] sm:$0xff]
  %v52 = vld [vmem:[%s1 + $0xa0] sm:$0xff]
  %v53 = vld [vmem:[%s1 + $0xa8] sm:$0xff]
  %v54 = vld [vmem:[%s1 + $0xb0] sm:$0xff]
  %v55 = vld [vmem:[%s1 + $0xb8] sm:$0xff]
  %v56 = vld [vmem:[%s1 + $0xc0] sm:$0xff]
  %v57 = vld [vmem:[%s1 + $0xc8] sm:$0xff]
  %v58 = vld [vmem:[%s1 + $0xd0] sm:$0xff]
  %v59 = vld [vmem:[%s1 + $0xd8] sm:$0xff]
  %v60 = vld [vmem:[%s1 + $0xe0] sm:$0xff]
  %v61 = vld [vmem:[%s1 + $0xe8] sm:$0xff]
  %v62 = vld [vmem:[%s1 + $0xf0] sm:$0xff]
  %v63 = vld [vmem:[%s1 + $0xf8] sm:$0xff]
  %v64 = vld [vmem:[%s2] sm:$0x1]
  %v66 = vlaneseq
  %v67 = vshrl.u32 %v66, 7
  %v68 = vsub.s32 0, %v67
  %v69 = vrot.slane %v64, %v68
  %71 = vmatprep.subr.mxu0 0.0
  %72 = vmatpush1.msra.mxu0 %v32
  %73 = vmatprep.subr.mxu0 0.0
  %74 = vmatpush1.msra.mxu0 %v33
  %75 = vmatprep.subr.mxu0 0.0
  %76 = vmatpush1.msra.mxu0 %v34
  %77 = vmatprep.subr.mxu0 0.0
  %78 = vmatpush1.msra.mxu0 %v35
  %79 = vmatprep.subr.mxu0 0.0
  %80 = vmatpush1.msra.mxu0 %v36
  %81 = vmatprep.subr.mxu0 0.0
  %82 = vmatpush1.msra.mxu0 %v37
  %83 = vmatprep.subr.mxu0 0.0
  %84 = vmatpush1.msra.mxu0 %v38
  %85 = vmatprep.subr.mxu0 0.0
  %86 = vmatpush1.msra.mxu0 %v39
  %87 = vmatprep.subr.mxu0 0.0
  %88 = vmatpush1.msra.mxu0 %v40
  %89 = vmatprep.subr.mxu0 0.0
  %90 = vmatpush1.msra.mxu0 %v41
  %91 = vmatprep.subr.mxu0 0.0
  %92 = vmatpush1.msra.mxu0 %v42
  %93 = vmatprep.subr.mxu0 0.0
  %94 = vmatpush1.msra.mxu0 %v43
  %95 = vmatprep.subr.mxu0 0.0
  %96 = vmatpush1.msra.mxu0 %v44
  %97 = vmatprep.subr.mxu0 0.0
  %98 = vmatpush1.msra.mxu0 %v45
  %99 = vmatprep.subr.mxu0 0.0
  %100 = vmatpush1.msra.mxu0 %v46
  %101 = vmatprep.subr.mxu0 0.0
  %102 = vmatpush1.msra.mxu0 %v47
  %103 = vmatprep.subr.mxu0 0.0
  %104 = vmatpush1.msra.mxu0 %v48
  %105 = vmatprep.subr.mxu0 0.0
  %106 = vmatpush1.msra.mxu0 %v49
  %107 = vmatprep.subr.mxu0 0.0
  %108 = vmatpush1.msra.mxu0 %v50
  %109 = vmatprep.subr.mxu0 0.0
  %110 = vmatpush1.msra.mxu0 %v51
  %111 = vmatprep.subr.mxu0 0.0
  %112 = vmatpush1.msra.mxu0 %v52
  %113 = vmatprep.subr.mxu0 0.0
  %114 = vmatpush1.msra.mxu0 %v53
  %115 = vmatprep.subr.mxu0 0.0
  %116 = vmatpush1.msra.mxu0 %v54
  %117 = vmatprep.subr.mxu0 0.0
  %118 = vmatpush1.msra.mxu0 %v55
  %119 = vmatprep.subr.mxu0 0.0
  %120 = vmatpush1.msra.mxu0 %v56
  %121 = vmatprep.subr.mxu0 0.0
  %122 = vmatpush1.msra.mxu0 %v57
  %123 = vmatprep.subr.mxu0 0.0
  %124 = vmatpush1.msra.mxu0 %v58
  %125 = vmatprep.subr.mxu0 0.0
  %126 = vmatpush1.msra.mxu0 %v59
  %127 = vmatprep.subr.mxu0 0.0
  %128 = vmatpush1.msra.mxu0 %v60
  %129 = vmatprep.subr.mxu0 0.0
  %130 = vmatpush1.msra.mxu0 %v61
  %131 = vmatprep.subr.mxu0 0.0
  %132 = vmatpush1.msra.mxu0 %v62
  %133 = vmatprep.subr.mxu0 0.0
  %134 = vmatpush1.msra.mxu0 %v63
  %135 = vmatprep.mubr.f32.mxu0 %v15
  %136 = vmatmul.mubr.f32.gmra.mrb[0].mxu0 %v14
  %v137 = vpop.f32.mrb[0].mxu0
  %v138 = vadd.f32 %v69, %v137
  %v139 = vpop.f32.mrb[0].mxu0
  %140 = vmatprep.mubr.f32.mxu0 %v17
  %141 = vmatmul.mubr.f32.gmra.mrb[0].mxu0 %v16
  %v142 = vpop.f32.mrb[0].mxu0
  %v143 = vadd.f32 %v69, %v142
  %v144 = vpop.f32.mrb[0].mxu0
  %145 = vmatprep.mubr.f32.mxu0 %v19
  %146 = vmatmul.mubr.f32.gmra.mrb[0].mxu0 %v18
  %v147 = vpop.f32.mrb[0].mxu0
  %v148 = vadd.f32 %v69, %v147
  %v149 = vpop.f32.mrb[0].mxu0
  %150 = vmatprep.mubr.f32.mxu0 %v21
  %151 = vmatmul.mubr.f32.gmra.mrb[0].mxu0 %v20
  %v152 = vpop.f32.mrb[0].mxu0
  %v153 = vadd.f32 %v69, %v152
  %v154 = vpop.f32.mrb[0].mxu0
  %155 = vmatprep.mubr.f32.mxu0 %v23
  %156 = vmatmul.mubr.f32.gmra.mrb[0].mxu0 %v22
  %v157 = vpop.f32.mrb[0].mxu0
  %v158 = vadd.f32 %v69, %v157
  %v159 = vpop.f32.mrb[0].mxu0
  %160 = vmatprep.mubr.f32.mxu0 %v25
  %161 = vmatmul.mubr.f32.gmra.mrb[0].mxu0 %v24
  %v162 = vpop.f32.mrb[0].mxu0
  %v163 = vadd.f32 %v69, %v162
  %v164 = vpop.f32.mrb[0].mxu0
  %165 = vmatprep.mubr.f32.mxu0 %v27
  %166 = vmatmul.mubr.f32.gmra.mrb[0].mxu0 %v26
  %v167 = vpop.f32.mrb[0].mxu0
  %v168 = vadd.f32 %v69, %v167
  %v169 = vpop.f32.mrb[0].mxu0
  %170 = vmatprep.mubr.f32.mxu0 %v29
  %171 = vmatmul.mubr.f32.gmra.mrb[0].mxu0 %v28
  %v172 = vpop.f32.mrb[0].mxu0
  %v173 = vadd.f32 %v69, %v172
  %v174 = vpop.f32.mrb[0].mxu0
  %175 = vmatprep.mubr.f32.mxu0 %v31
  %176 = vmatmul.mubr.f32.gmra.mrb[0].mxu0 %v30
  %v177 = vpop.f32.mrb[0].mxu0
  %v178 = vadd.f32 %v69, %v177
  %v179 = vpop.f32.mrb[0].mxu0
  %180 = vdwg.mxu0
  %181 = vst [vmem:[%s3] sm:$0xff] %v138
  %182 = vst [vmem:[%s3 + $0x8] sm:$0xff] %v143
  %183 = vst [vmem:[%s3 + $0x10] sm:$0xff] %v148
  %184 = vst [vmem:[%s3 + $0x18] sm:$0xff] %v153
  %185 = vst [vmem:[%s3 + $0x20] sm:$0xff] %v158
  %186 = vst [vmem:[%s3 + $0x28] sm:$0xff] %v163
  %187 = vst [vmem:[%s3 + $0x30] sm:$0xff] %v168
  %188 = vst [vmem:[%s3 + $0x38] sm:$0xff] %v173
  %189 = vst [vmem:[%s3 + $0x40] sm:$0xff] %v178
  // Predicated region
  $region14: #{attention_model_forward.1} parent=0 // pred_check
    _
  $region15: #{attention_model_forward.1} parent=0 // pred_check_branch
    %191 = sbr.rel (0) target = $region17
  $region16: #{attention_model_forward.1} parent=0 // pred_region
    _
  $region17: #{attention_model_forward.1} parent=0 // pred_fallthru
    _
  // Predicated region
  $region18: #{attention_model_forward.1} parent=0 // pred_check
    _
  $region19: #{attention_model_forward.1} parent=0 // pred_check_branch
    %193 = sbr.rel (0) target = $region21
  $region20: #{attention_model_forward.1} parent=0 // pred_region
    _
  $region21: #{attention_model_forward.1} parent=0 // pred_fallthru
    _

</llo_original>
